<compile_context>
chip_gen: v7x
topology: tpu7x:2x2x1
jax: 0.10.0
libtpu: 0.0.40
codegen_flags: <defaults>
</compile_context>

<pallas_src>
import functools
import math

import jax
import jax.numpy as jnp
from jax.experimental import pallas as pl
from jax.experimental.pallas import tpu as pltpu

# ---- model configuration (consistent with the PyTorch module) --------------
HIDDEN = 32                 # hidden_units
M_FEATS = 8                 # Fourier features per encoder (each emits cos+sin)
D_IN = 1                    # raw coordinate dimension (1-D PDE input)
INPUT_SIZE = 4 * M_FEATS    # hstack(encoder_2(x), encoder_50(x)) -> MLP input
N = 128                     # demo batch size
DTYPE = jnp.float32

DEFAULT_TILE = 8192         # batch rows (lanes) per grid step.


def _default_use_bf16():
    """bf16 transcendentals only where the EUP/VPU have a bf16 path (v6e/v7x)."""
    try:
        kind = jax.devices()[0].device_kind.lower()
    except Exception:  # pragma: no cover - defensive
        return False
    return any(tag in kind for tag in ("v6", "v7", "tpu7"))


# ----------------------------- kernels --------------------------------------
def _mlp_body_t(h0, w_refs, b_refs, wlast_ref, blast_ref, compute_dtype):
    """Transposed MLP. h0: (features, TM) in compute_dtype.

    Matmuls accumulate in f32 (preferred_element_type); the tanh input/output
    use compute_dtype (bf16 on v6e/v7x -> ~2x EUP rate).  The 32->1 head is a
    f32 VPU multiply + sublane reduce.
    """
    h = h0
    for i in range(5):
        z = (jnp.dot(w_refs[i][...], h, preferred_element_type=jnp.float32)
             + b_refs[i][...])                          # (HIDDEN, TM) f32
        h = jnp.tanh(z.astype(compute_dtype))           # EUP in compute_dtype
    hf = h.astype(jnp.float32)
    # wlast_ref: (HIDDEN, 1); hf: (HIDDEN, TM)  ->  (1, TM)
    return jnp.sum(hf * wlast_ref[...], axis=0, keepdims=True) + blast_ref[...]


def pinn_fourier_kernel(x_ref, freq_ref, phase_ref, *rest, compute_dtype):
    """Fourier-embedding branch: raw 1-D coordinates, x tile is (1, TM)."""
    w_refs = rest[0:5]
    b_refs = rest[5:10]
    wlast_ref = rest[10]
    blast_ref = rest[11]
    out_ref = rest[12]

    # Single lane-dense trig pass.  Argument and sin stay f32: the phase trick
    # cos(t)=sin(t+pi/2) and the 2*pi*50 frequency range would be quantized
    # away by a bf16 argument.
    feats = jnp.sin(x_ref[...] * freq_ref[...] + phase_ref[...])  # (32, TM) f32
    out_ref[...] = _mlp_body_t(feats.astype(compute_dtype),
                               w_refs, b_refs, wlast_ref, blast_ref,
                               compute_dtype)


def pinn_mlp_kernel(x_ref, *rest, compute_dtype):
    """Direct branch: x already embedded, tile is (TM, INPUT_SIZE)."""
    w_refs = rest[0:5]
    b_refs = rest[5:10]
    wlast_ref = rest[10]
    blast_ref = rest[11]
    out_ref = rest[12]

    # Transpose the small-feature tile in-kernel (XLU has slack; EUP binds),
    # so the wrapper never does a full HBM relayout of x.
    h0 = x_ref[...].T.astype(compute_dtype)              # (INPUT_SIZE, TM)
    out_ref[...] = _mlp_body_t(h0, w_refs, b_refs, wlast_ref, blast_ref,
                               compute_dtype)


# ----------------------------- wrapper ---------------------------------------
def _round_up(v, m):
    return ((v + m - 1) // m) * m


def _choose_tile(n, tile):
    """Batch-lane tile (multiple of 128).

    Large tiles amortize per-grid-step overhead; when the batch allows we also
    keep the grid at >= 2 (balanced) steps so the "parallel" axis can be split
    across v7x's two TensorCores (no-op on single-TC v5e/v6e).
    """
    n_al = _round_up(max(n, 1), 128)
    if n_al <= 128:
        return 128
    tm = min(_round_up(tile, 128), _round_up(pl.cdiv(n_al, 2), 128))
    return max(tm, 128)


def prepare_kernel_params(b2, b50, ws, bs, *, use_bf16=None):
    """One-time parameter transform into the kernel's transposed layout."""
    if use_bf16 is None:
        use_bf16 = _default_use_bf16()
    compute_dtype = jnp.bfloat16 if use_bf16 else jnp.float32

    two_pi = 2.0 * math.pi
    half_pi = 0.5 * math.pi
    # Feature order matches the reference: [cos2 (8), sin2 (8), cos50 (8), sin50 (8)]
    freq_row = two_pi * jnp.concatenate([b2, b2, b50, b50], axis=1)   # (1, 32)
    phase_row = jnp.concatenate(
        [jnp.full((1, M_FEATS), half_pi, DTYPE), jnp.zeros((1, M_FEATS), DTYPE),
         jnp.full((1, M_FEATS), half_pi, DTYPE), jnp.zeros((1, M_FEATS), DTYPE)],
        axis=1,
    )
    return {
        "freq": freq_row.T,                                     # (32, 1) f32
        "phase": phase_row.T,                                   # (32, 1) f32
        "w_ts": tuple(ws[i].T.astype(compute_dtype) for i in range(5)),  # (out,in)
        "b_cols": tuple(bs[i].T for i in range(5)),             # (out, 1) f32
        "w_last": ws[5],                                        # (HIDDEN, 1) f32
        "b_last": bs[5],                                        # (1, 1) f32
        "compute_dtype": compute_dtype,
    }


def pinn_forward(x, prepared, *, tile=DEFAULT_TILE):
    """Mirrors PINN.forward: static branch on x.shape[1].  Returns (N, 1) f32."""
    n = x.shape[0]
    direct = x.shape[1] == INPUT_SIZE
    tm = _choose_tile(n, tile)
    grid = (pl.cdiv(n, tm),)
    cd = prepared["compute_dtype"]

    consts = (*prepared["w_ts"], *prepared["b_cols"],
              prepared["w_last"], prepared["b_last"])

    if direct:
        kernel = functools.partial(pinn_mlp_kernel, compute_dtype=cd)
        xk = x                                   # (n, 32), no wrapper relayout
        x_spec = pl.BlockSpec((tm, INPUT_SIZE), lambda i: (i, 0))
        operands = (xk, *consts)
        trans_per_pt = 5 * HIDDEN
    else:
        assert x.shape[1] == D_IN, "Fourier branch expects 1-D coordinates"
        kernel = functools.partial(pinn_fourier_kernel, compute_dtype=cd)
        xk = x.reshape(1, n)                     # contiguous reshape (free)
        x_spec = pl.BlockSpec((1, tm), lambda i: (0, i))
        operands = (xk, prepared["freq"], prepared["phase"], *consts)
        trans_per_pt = 5 * HIDDEN + INPUT_SIZE

    def const_spec(a):
        # Full-array block with constant index_map: stays VMEM-resident, the
        # pipeliner skips re-DMA when the block index does not change.
        return pl.BlockSpec(a.shape, lambda i: (0, 0))

    in_specs = [x_spec] + [const_spec(a) for a in operands[1:]]

    cost = pl.CostEstimate(
        flops=int(n) * (5 * 2 * HIDDEN * HIDDEN + 2 * HIDDEN),
        transcendentals=int(n) * trans_per_pt,
        bytes_accessed=int(n) * (x.shape[1] + 1) * 4,
    )

    # No wrapper-side padding: partial last blocks read garbage-but-finite
    # lanes (sin/tanh only) and OOB output lanes are masked on writeback.
    out = pl.pallas_call(
        kernel,
        out_shape=jax.ShapeDtypeStruct((1, n), DTYPE),
        grid=grid,
        in_specs=in_specs,
        out_specs=pl.BlockSpec((1, tm), lambda i: (0, i)),
        compiler_params=pltpu.CompilerParams(
            dimension_semantics=("parallel",),
            vmem_limit_bytes=32 * 1024 * 1024,   # raises v5e's 16 MiB default
        ),
        cost_estimate=cost,
    )(*operands)
    return out.reshape(n, 1)


# -------------------------- reference (pure JAX) ------------------------------
def pinn_forward_ref(x, b2, b50, ws, bs):
    if x.shape[1] != INPUT_SIZE:
        p2 = 2.0 * math.pi * (x * b2)
        p50 = 2.0 * math.pi * (x * b50)
        x = jnp.concatenate(
            [jnp.cos(p2), jnp.sin(p2), jnp.cos(p50), jnp.sin(p50)], axis=-1
        )
    h = x
    for i in range(5):
        h = jnp.tanh(h @ ws[i] + bs[i])
    return h @ ws[5] + bs[5]


# ------------------------------ params ----------------------------------------
def init_params(key):
    """Deterministic synthetic init (PyTorch-style uniform for Linear layers)."""
    keys = jax.random.split(key, 16)
    b2 = 2.0 * jax.random.normal(keys[0], (1, M_FEATS), DTYPE)
    b50 = 50.0 * jax.random.normal(keys[1], (1, M_FEATS), DTYPE)

    dims = [INPUT_SIZE, HIDDEN, HIDDEN, HIDDEN, HIDDEN, HIDDEN, 1]
    ws, bs = [], []
    for i in range(6):
        fan_in, fan_out = dims[i], dims[i + 1]
        bound = 1.0 / math.sqrt(fan_in)
        w = jax.random.uniform(keys[2 + 2 * i], (fan_in, fan_out), DTYPE, -bound, bound)
        b = jax.random.uniform(keys[3 + 2 * i], (1, fan_out), DTYPE, -bound, bound)
        ws.append(w)
        bs.append(b)
    return b2, b50, ws, bs


# TODO(synk): lossPDE needs u_xx via autodiff through this forward; pallas_call
# is not differentiable by default, so a custom_vjp (with a Pallas or pure-JAX
# backward) around pinn_forward is required before wiring up the PDE loss.
# (bf16-transcendental mode should be re-validated for u_xx accuracy.)

if __name__ == "__main__":
    key = jax.random.PRNGKey(0)
    pk, xk1, xk2 = jax.random.split(key, 3)
    b2, b50, ws, bs = init_params(pk)

    x_small = jax.random.uniform(xk1, (N, D_IN), DTYPE, -1.0, 1.0)
    x_big = jax.random.uniform(xk2, (600, D_IN), DTYPE, -1.0, 1.0)
    x_emb = jax.random.uniform(xk1, (N, INPUT_SIZE), DTYPE, -1.0, 1.0)

    ref_small = pinn_forward_ref(x_small, b2, b50, ws, bs)
    ref_big = pinn_forward_ref(x_big, b2, b50, ws, bs)
    ref_emb = pinn_forward_ref(x_emb, b2, b50, ws, bs)

    def run_checks(prepared, atol, rtol):
        # 1) Raw 1-D coords -> Fourier branch (single tile).
        out = jax.block_until_ready(pinn_forward(x_small, prepared))
        assert out.shape == (N, 1)
        assert jnp.allclose(out, ref_small, atol=atol, rtol=rtol)
        # 2) Ragged batch -> multi-tile grid with a partial last block.
        out_b = jax.block_until_ready(pinn_forward(x_big, prepared, tile=256))
        assert out_b.shape == (600, 1)
        assert jnp.allclose(out_b, ref_big, atol=atol, rtol=rtol)
        # 3) Pre-embedded inputs -> direct branch (in-kernel transpose).
        out_e = jax.block_until_ready(pinn_forward(x_emb, prepared))
        assert out_e.shape == (N, 1)
        assert jnp.allclose(out_e, ref_emb, atol=atol, rtol=rtol)

    # f32 reference mode: tight functional check (cos computed as sin(t+pi/2),
    # |t| up to ~2*pi*50, so a few 1e-5 of f32 argument error is expected).
    prepared_f32 = prepare_kernel_params(b2, b50, ws, bs, use_bf16=False)
    run_checks(prepared_f32, atol=1e-4, rtol=1e-4)

    # Auto (fast) mode: bf16 tanh / weights / activations on v6e & v7x only.
    # Looser tolerance — bf16 carries ~3 significant decimal digits.
    prepared_fast = prepare_kernel_params(b2, b50, ws, bs)
    if prepared_fast["compute_dtype"] == jnp.bfloat16:
        run_checks(prepared_fast, atol=5e-2, rtol=5e-2)

    print("KERNEL_OK")
</pallas_src>

<mosaic_0001>
module attributes {stable_mosaic.version = 11 : i64} {
  func.func @pinn_fourier_kernel(%arg0: i32, %arg1: memref<1x128xf32, #tpu.memory_space<vmem>>, %arg2: memref<32x1xf32, #tpu.memory_space<vmem>>, %arg3: memref<32x1xf32, #tpu.memory_space<vmem>>, %arg4: memref<32x32xf32, #tpu.memory_space<vmem>>, %arg5: memref<32x32xf32, #tpu.memory_space<vmem>>, %arg6: memref<32x32xf32, #tpu.memory_space<vmem>>, %arg7: memref<32x32xf32, #tpu.memory_space<vmem>>, %arg8: memref<32x32xf32, #tpu.memory_space<vmem>>, %arg9: memref<32x1xf32, #tpu.memory_space<vmem>>, %arg10: memref<32x1xf32, #tpu.memory_space<vmem>>, %arg11: memref<32x1xf32, #tpu.memory_space<vmem>>, %arg12: memref<32x1xf32, #tpu.memory_space<vmem>>, %arg13: memref<32x1xf32, #tpu.memory_space<vmem>>, %arg14: memref<32x1xf32, #tpu.memory_space<vmem>>, %arg15: memref<1x1xf32, #tpu.memory_space<vmem>>, %arg16: memref<1x128xf32, #tpu.memory_space<vmem>>) attributes {dimension_semantics = [#tpu.dimension_semantics<parallel>], iteration_bounds = array<i64: 1>, scalar_prefetch = 0 : i64, scratch_operands = 0 : i64, tpu.core_type = #tpu.core_type<tc>, window_params = [{transform_indices = @transform_0, window_bounds = array<i64: 1, 128>}, {pipeline_mode = #tpu.pipeline_mode<synchronous>, transform_indices = @transform_1, window_bounds = array<i64: 32, 1>}, {pipeline_mode = #tpu.pipeline_mode<synchronous>, transform_indices = @transform_2, window_bounds = array<i64: 32, 1>}, {pipeline_mode = #tpu.pipeline_mode<synchronous>, transform_indices = @transform_3, window_bounds = array<i64: 32, 32>}, {pipeline_mode = #tpu.pipeline_mode<synchronous>, transform_indices = @transform_4, window_bounds = array<i64: 32, 32>}, {pipeline_mode = #tpu.pipeline_mode<synchronous>, transform_indices = @transform_5, window_bounds = array<i64: 32, 32>}, {pipeline_mode = #tpu.pipeline_mode<synchronous>, transform_indices = @transform_6, window_bounds = array<i64: 32, 32>}, {pipeline_mode = #tpu.pipeline_mode<synchronous>, transform_indices = @transform_7, window_bounds = array<i64: 32, 32>}, {pipeline_mode = #tpu.pipeline_mode<synchronous>, transform_indices = @transform_8, window_bounds = array<i64: 32, 1>}, {pipeline_mode = #tpu.pipeline_mode<synchronous>, transform_indices = @transform_9, window_bounds = array<i64: 32, 1>}, {pipeline_mode = #tpu.pipeline_mode<synchronous>, transform_indices = @transform_10, window_bounds = array<i64: 32, 1>}, {pipeline_mode = #tpu.pipeline_mode<synchronous>, transform_indices = @transform_11, window_bounds = array<i64: 32, 1>}, {pipeline_mode = #tpu.pipeline_mode<synchronous>, transform_indices = @transform_12, window_bounds = array<i64: 32, 1>}, {pipeline_mode = #tpu.pipeline_mode<synchronous>, transform_indices = @transform_13, window_bounds = array<i64: 32, 1>}, {pipeline_mode = #tpu.pipeline_mode<synchronous>, transform_indices = @transform_14, window_bounds = array<i64: 1, 1>}, {transform_indices = @transform_15, window_bounds = array<i64: 1, 128>}]} {
    %c0 = arith.constant 0 : index
    %c0_0 = arith.constant 0 : index
    %0 = vector.load %arg1[%c0, %c0_0] : memref<1x128xf32, #tpu.memory_space<vmem>>, vector<1x128xf32>
    %c0_1 = arith.constant 0 : index
    %c0_2 = arith.constant 0 : index
    %1 = vector.load %arg2[%c0_1, %c0_2] : memref<32x1xf32, #tpu.memory_space<vmem>>, vector<32x1xf32>
    %2 = vector.broadcast %0 : vector<1x128xf32> to vector<32x128xf32>
    %3 = vector.broadcast %1 : vector<32x1xf32> to vector<32x128xf32>
    %4 = arith.mulf %2, %3 : vector<32x128xf32>
    %c0_3 = arith.constant 0 : index
    %c0_4 = arith.constant 0 : index
    %5 = vector.load %arg3[%c0_3, %c0_4] : memref<32x1xf32, #tpu.memory_space<vmem>>, vector<32x1xf32>
    %6 = vector.broadcast %5 : vector<32x1xf32> to vector<32x128xf32>
    %7 = arith.addf %4, %6 : vector<32x128xf32>
    %8 = math.sin %7 : vector<32x128xf32>
    %c0_5 = arith.constant 0 : index
    %c0_6 = arith.constant 0 : index
    %9 = vector.load %arg4[%c0_5, %c0_6] : memref<32x32xf32, #tpu.memory_space<vmem>>, vector<32x32xf32>
    %cst = arith.constant dense<0.000000e+00> : vector<32x128xf32>
    %10 = tpu.matmul %9, %8, %cst {dimension_numbers = #tpu.dot_dimension_numbers<[1], [0], [0], [1], [0, 0, 1, 1], [], []>} : vector<32x32xf32>, vector<32x128xf32>, vector<32x128xf32> -> vector<32x128xf32>
    %c0_7 = arith.constant 0 : index
    %c0_8 = arith.constant 0 : index
    %11 = vector.load %arg9[%c0_7, %c0_8] : memref<32x1xf32, #tpu.memory_space<vmem>>, vector<32x1xf32>
    %12 = vector.broadcast %11 : vector<32x1xf32> to vector<32x128xf32>
    %13 = arith.addf %10, %12 : vector<32x128xf32>
    %14 = math.tanh %13 : vector<32x128xf32>
    %c0_9 = arith.constant 0 : index
    %c0_10 = arith.constant 0 : index
    %15 = vector.load %arg5[%c0_9, %c0_10] : memref<32x32xf32, #tpu.memory_space<vmem>>, vector<32x32xf32>
    %cst_11 = arith.constant dense<0.000000e+00> : vector<32x128xf32>
    %16 = tpu.matmul %15, %14, %cst_11 {dimension_numbers = #tpu.dot_dimension_numbers<[1], [0], [0], [1], [0, 0, 1, 1], [], []>} : vector<32x32xf32>, vector<32x128xf32>, vector<32x128xf32> -> vector<32x128xf32>
    %c0_12 = arith.constant 0 : index
    %c0_13 = arith.constant 0 : index
    %17 = vector.load %arg10[%c0_12, %c0_13] : memref<32x1xf32, #tpu.memory_space<vmem>>, vector<32x1xf32>
    %18 = vector.broadcast %17 : vector<32x1xf32> to vector<32x128xf32>
    %19 = arith.addf %16, %18 : vector<32x128xf32>
    %20 = math.tanh %19 : vector<32x128xf32>
    %c0_14 = arith.constant 0 : index
    %c0_15 = arith.constant 0 : index
    %21 = vector.load %arg6[%c0_14, %c0_15] : memref<32x32xf32, #tpu.memory_space<vmem>>, vector<32x32xf32>
    %cst_16 = arith.constant dense<0.000000e+00> : vector<32x128xf32>
    %22 = tpu.matmul %21, %20, %cst_16 {dimension_numbers = #tpu.dot_dimension_numbers<[1], [0], [0], [1], [0, 0, 1, 1], [], []>} : vector<32x32xf32>, vector<32x128xf32>, vector<32x128xf32> -> vector<32x128xf32>
    %c0_17 = arith.constant 0 : index
    %c0_18 = arith.constant 0 : index
    %23 = vector.load %arg11[%c0_17, %c0_18] : memref<32x1xf32, #tpu.memory_space<vmem>>, vector<32x1xf32>
    %24 = vector.broadcast %23 : vector<32x1xf32> to vector<32x128xf32>
    %25 = arith.addf %22, %24 : vector<32x128xf32>
    %26 = math.tanh %25 : vector<32x128xf32>
    %c0_19 = arith.constant 0 : index
    %c0_20 = arith.constant 0 : index
    %27 = vector.load %arg7[%c0_19, %c0_20] : memref<32x32xf32, #tpu.memory_space<vmem>>, vector<32x32xf32>
    %cst_21 = arith.constant dense<0.000000e+00> : vector<32x128xf32>
    %28 = tpu.matmul %27, %26, %cst_21 {dimension_numbers = #tpu.dot_dimension_numbers<[1], [0], [0], [1], [0, 0, 1, 1], [], []>} : vector<32x32xf32>, vector<32x128xf32>, vector<32x128xf32> -> vector<32x128xf32>
    %c0_22 = arith.constant 0 : index
    %c0_23 = arith.constant 0 : index
    %29 = vector.load %arg12[%c0_22, %c0_23] : memref<32x1xf32, #tpu.memory_space<vmem>>, vector<32x1xf32>
    %30 = vector.broadcast %29 : vector<32x1xf32> to vector<32x128xf32>
    %31 = arith.addf %28, %30 : vector<32x128xf32>
    %32 = math.tanh %31 : vector<32x128xf32>
    %c0_24 = arith.constant 0 : index
    %c0_25 = arith.constant 0 : index
    %33 = vector.load %arg8[%c0_24, %c0_25] : memref<32x32xf32, #tpu.memory_space<vmem>>, vector<32x32xf32>
    %cst_26 = arith.constant dense<0.000000e+00> : vector<32x128xf32>
    %34 = tpu.matmul %33, %32, %cst_26 {dimension_numbers = #tpu.dot_dimension_numbers<[1], [0], [0], [1], [0, 0, 1, 1], [], []>} : vector<32x32xf32>, vector<32x128xf32>, vector<32x128xf32> -> vector<32x128xf32>
    %c0_27 = arith.constant 0 : index
    %c0_28 = arith.constant 0 : index
    %35 = vector.load %arg13[%c0_27, %c0_28] : memref<32x1xf32, #tpu.memory_space<vmem>>, vector<32x1xf32>
    %36 = vector.broadcast %35 : vector<32x1xf32> to vector<32x128xf32>
    %37 = arith.addf %34, %36 : vector<32x128xf32>
    %38 = math.tanh %37 : vector<32x128xf32>
    %c0_29 = arith.constant 0 : index
    %c0_30 = arith.constant 0 : index
    %39 = vector.load %arg14[%c0_29, %c0_30] : memref<32x1xf32, #tpu.memory_space<vmem>>, vector<32x1xf32>
    %40 = vector.broadcast %39 : vector<32x1xf32> to vector<32x128xf32>
    %41 = arith.mulf %38, %40 : vector<32x128xf32>
    %cst_31 = arith.constant dense<0.000000e+00> : vector<128xf32>
    %42 = vector.multi_reduction <add>, %41, %cst_31 [0] : vector<32x128xf32> to vector<128xf32>
    %43 = vector.shape_cast %42 : vector<128xf32> to vector<1x128xf32>
    %c0_32 = arith.constant 0 : index
    %c0_33 = arith.constant 0 : index
    %44 = vector.load %arg15[%c0_32, %c0_33] : memref<1x1xf32, #tpu.memory_space<vmem>>, vector<1x1xf32>
    %45 = vector.broadcast %44 : vector<1x1xf32> to vector<1x128xf32>
    %46 = arith.addf %43, %45 : vector<1x128xf32>
    %c0_34 = arith.constant 0 : index
    %c0_35 = arith.constant 0 : index
    %47 = vector.load %arg16[%c0_34, %c0_35] : memref<1x128xf32, #tpu.memory_space<vmem>>, vector<1x128xf32>
    tpu.vector_store %arg16[%c0_34, %c0_35], %46 {strides = array<i32>} : memref<1x128xf32, #tpu.memory_space<vmem>>, vector<1x128xf32>,
    return
  }
  func.func @transform_0(%arg0: i32) -> (i32, i32) {
    %c0_i32 = arith.constant 0 : i32
    %c0_i32_0 = arith.constant 0 : i32
    return %c0_i32, %arg0 : i32, i32
  }
  func.func @transform_1(%arg0: i32) -> (i32, i32) {
    %c0_i32 = arith.constant 0 : i32
    %c0_i32_0 = arith.constant 0 : i32
    %c0_i32_1 = arith.constant 0 : i32
    return %c0_i32, %c0_i32_0 : i32, i32
  }
  func.func @transform_2(%arg0: i32) -> (i32, i32) {
    %c0_i32 = arith.constant 0 : i32
    %c0_i32_0 = arith.constant 0 : i32
    %c0_i32_1 = arith.constant 0 : i32
    return %c0_i32, %c0_i32_0 : i32, i32
  }
  func.func @transform_3(%arg0: i32) -> (i32, i32) {
    %c0_i32 = arith.constant 0 : i32
    %c0_i32_0 = arith.constant 0 : i32
    %c0_i32_1 = arith.constant 0 : i32
    return %c0_i32, %c0_i32_0 : i32, i32
  }
  func.func @transform_4(%arg0: i32) -> (i32, i32) {
    %c0_i32 = arith.constant 0 : i32
    %c0_i32_0 = arith.constant 0 : i32
    %c0_i32_1 = arith.constant 0 : i32
    return %c0_i32, %c0_i32_0 : i32, i32
  }
  func.func @transform_5(%arg0: i32) -> (i32, i32) {
    %c0_i32 = arith.constant 0 : i32
    %c0_i32_0 = arith.constant 0 : i32
    %c0_i32_1 = arith.constant 0 : i32
    return %c0_i32, %c0_i32_0 : i32, i32
  }
  func.func @transform_6(%arg0: i32) -> (i32, i32) {
    %c0_i32 = arith.constant 0 : i32
    %c0_i32_0 = arith.constant 0 : i32
    %c0_i32_1 = arith.constant 0 : i32
    return %c0_i32, %c0_i32_0 : i32, i32
  }
  func.func @transform_7(%arg0: i32) -> (i32, i32) {
    %c0_i32 = arith.constant 0 : i32
    %c0_i32_0 = arith.constant 0 : i32
    %c0_i32_1 = arith.constant 0 : i32
    return %c0_i32, %c0_i32_0 : i32, i32
  }
  func.func @transform_8(%arg0: i32) -> (i32, i32) {
    %c0_i32 = arith.constant 0 : i32
    %c0_i32_0 = arith.constant 0 : i32
    %c0_i32_1 = arith.constant 0 : i32
    return %c0_i32, %c0_i32_0 : i32, i32
  }
  func.func @transform_9(%arg0: i32) -> (i32, i32) {
    %c0_i32 = arith.constant 0 : i32
    %c0_i32_0 = arith.constant 0 : i32
    %c0_i32_1 = arith.constant 0 : i32
    return %c0_i32, %c0_i32_0 : i32, i32
  }
  func.func @transform_10(%arg0: i32) -> (i32, i32) {
    %c0_i32 = arith.constant 0 : i32
    %c0_i32_0 = arith.constant 0 : i32
    %c0_i32_1 = arith.constant 0 : i32
    return %c0_i32, %c0_i32_0 : i32, i32
  }
  func.func @transform_11(%arg0: i32) -> (i32, i32) {
    %c0_i32 = arith.constant 0 : i32
    %c0_i32_0 = arith.constant 0 : i32
    %c0_i32_1 = arith.constant 0 : i32
    return %c0_i32, %c0_i32_0 : i32, i32
  }
  func.func @transform_12(%arg0: i32) -> (i32, i32) {
    %c0_i32 = arith.constant 0 : i32
    %c0_i32_0 = arith.constant 0 : i32
    %c0_i32_1 = arith.constant 0 : i32
    return %c0_i32, %c0_i32_0 : i32, i32
  }
  func.func @transform_13(%arg0: i32) -> (i32, i32) {
    %c0_i32 = arith.constant 0 : i32
    %c0_i32_0 = arith.constant 0 : i32
    %c0_i32_1 = arith.constant 0 : i32
    return %c0_i32, %c0_i32_0 : i32, i32
  }
  func.func @transform_14(%arg0: i32) -> (i32, i32) {
    %c0_i32 = arith.constant 0 : i32
    %c0_i32_0 = arith.constant 0 : i32
    %c0_i32_1 = arith.constant 0 : i32
    return %c0_i32, %c0_i32_0 : i32, i32
  }
  func.func @transform_15(%arg0: i32) -> (i32, i32) {
    %c0_i32 = arith.constant 0 : i32
    %c0_i32_0 = arith.constant 0 : i32
    return %c0_i32, %arg0 : i32, i32
  }
}

</mosaic_0001>

<llo_original>
// kernel: tpu_custom_call.1
$region0: #{tpu_custom_call.1}
  #allocation0 [shape = 'u32[]', space=smem, size = 0x4, offset = 0x4, fixed_abs, tag = 'smem constant byte address 0x4 - core index']
  #allocation1 [shape = 'u32[144,128]{1,0:T(1,128)}', space=vmem, size = 0x12000, scoped, tag = 'internal scratch']
  #allocation2 [shape = 'f32[1,1]{1,0:T(1,128)S(1)}', space=vmem, size = 0x200, scoped, tag = 'scoped memory for tpu_custom_call.1']
  %s0 = inlined_call_operand.vmem [shape: f32[1,128], index: 0, kind: input, shape index: {}]
  %s1 = inlined_call_operand.vmem [shape: f32[32,1], index: 1, kind: input, shape index: {}]
  %s2 = inlined_call_operand.vmem [shape: f32[32,1], index: 2, kind: input, shape index: {}]
  %s3 = inlined_call_operand.vmem [shape: f32[32,32], index: 3, kind: input, shape index: {}]
  %s4 = inlined_call_operand.vmem [shape: f32[32,32], index: 4, kind: input, shape index: {}]
  %s5 = inlined_call_operand.vmem [shape: f32[32,32], index: 5, kind: input, shape index: {}]
  %s6 = inlined_call_operand.vmem [shape: f32[32,32], index: 6, kind: input, shape index: {}]
  %s7 = inlined_call_operand.vmem [shape: f32[32,32], index: 7, kind: input, shape index: {}]
  %s8 = inlined_call_operand.vmem [shape: f32[32,1], index: 8, kind: input, shape index: {}]
  %s9 = inlined_call_operand.vmem [shape: f32[32,1], index: 9, kind: input, shape index: {}]
  %s10 = inlined_call_operand.vmem [shape: f32[32,1], index: 10, kind: input, shape index: {}]
  %s11 = inlined_call_operand.vmem [shape: f32[32,1], index: 11, kind: input, shape index: {}]
  %s12 = inlined_call_operand.vmem [shape: f32[32,1], index: 12, kind: input, shape index: {}]
  %s13 = inlined_call_operand.vmem [shape: f32[32,1], index: 13, kind: input, shape index: {}]
  %s14 = inlined_call_operand.<no memory space> [shape: f32[1,1], index: 14, kind: input, shape index: {}]
  %s15 = inlined_call_operand.hbm [shape: f32[1,128], index: 15, kind: output, shape index: {}]
  %s16 = sld [smem:[#allocation0]]
  $region70: #{tpu_custom_call.1} parent=0
    _
  %s18 = ssub.s32 1, %s16
  %s19 = scalar_select 0, %s18, %s16
  %v20 = vstv %s14
  %21 = vst [vmem:[#allocation2] sm:$0x1] %v20
  $region1: #{tpu_custom_call.1} parent=0
    #allocation3 [shape = 'u8[512]{0}', space=vmem, size = 0x400, scoped, tag = 'output window, operand 0, single buffered']
    #allocation4 [shape = 's32[1]{0}', space=sflag, size = 0x4, scoped, tag = 'scoped memory for tpu_custom_call.1']
    %22 = vsyncpa [#allocation4], 0
    // Predicated region
    $region2: #{tpu_custom_call.1} parent=1 // pred_check
      _
    $region3: #{tpu_custom_call.1} parent=1 // pred_check_branch
      %24 = sbr.rel (0) target = $region5
    $region4: #{tpu_custom_call.1} parent=1 // pred_region
      _
    $region5: #{tpu_custom_call.1} parent=1 // pred_fallthru
      _
    // Predicated region
    $region6: #{tpu_custom_call.1} parent=1 // pred_check
      _
    $region7: #{tpu_custom_call.1} parent=1 // pred_check_branch
      %26 = sbr.rel (0) target = $region9
    $region8: #{tpu_custom_call.1} parent=1 // pred_region
      _
    $region9: #{tpu_custom_call.1} parent=1 // pred_fallthru
      _
    // Predicated region
    $region10: #{tpu_custom_call.1} parent=1 // pred_check
      _
    $region11: #{tpu_custom_call.1} parent=1 // pred_check_branch
      %28 = sbr.rel (0) target = $region13
    $region12: #{tpu_custom_call.1} parent=1 // pred_region
      _
    $region13: #{tpu_custom_call.1} parent=1 // pred_fallthru
      _
    // Predicated region
    $region14: #{tpu_custom_call.1} parent=1 // pred_check
      _
    $region15: #{tpu_custom_call.1} parent=1 // pred_check_branch
      %30 = sbr.rel (0) target = $region17
    $region16: #{tpu_custom_call.1} parent=1 // pred_region
      _
    $region17: #{tpu_custom_call.1} parent=1 // pred_fallthru
      _
    // Predicated region
    $region18: #{tpu_custom_call.1} parent=1 // pred_check
      _
    $region19: #{tpu_custom_call.1} parent=1 // pred_check_branch
      %32 = sbr.rel (0) target = $region21
    $region20: #{tpu_custom_call.1} parent=1 // pred_region
      _
    $region21: #{tpu_custom_call.1} parent=1 // pred_fallthru
      _
    // Predicated region
    $region22: #{tpu_custom_call.1} parent=1 // pred_check
      _
    $region23: #{tpu_custom_call.1} parent=1 // pred_check_branch
      %34 = sbr.rel (0) target = $region25
    $region24: #{tpu_custom_call.1} parent=1 // pred_region
      _
    $region25: #{tpu_custom_call.1} parent=1 // pred_fallthru
      _
    // Predicated region
    $region26: #{tpu_custom_call.1} parent=1 // pred_check
      _
    $region27: #{tpu_custom_call.1} parent=1 // pred_check_branch
      %36 = sbr.rel (0) target = $region29
    $region28: #{tpu_custom_call.1} parent=1 // pred_region
      _
    $region29: #{tpu_custom_call.1} parent=1 // pred_fallthru
      _
    // Predicated region
    $region30: #{tpu_custom_call.1} parent=1 // pred_check
      _
    $region31: #{tpu_custom_call.1} parent=1 // pred_check_branch
      %38 = sbr.rel (0) target = $region33
    $region32: #{tpu_custom_call.1} parent=1 // pred_region
      _
    $region33: #{tpu_custom_call.1} parent=1 // pred_fallthru
      _
    // Predicated region
    $region34: #{tpu_custom_call.1} parent=1 // pred_check
      _
    $region35: #{tpu_custom_call.1} parent=1 // pred_check_branch
      %40 = sbr.rel (0) target = $region37
    $region36: #{tpu_custom_call.1} parent=1 // pred_region
      _
    $region37: #{tpu_custom_call.1} parent=1 // pred_fallthru
      _
    // Predicated region
    $region38: #{tpu_custom_call.1} parent=1 // pred_check
      _
    $region39: #{tpu_custom_call.1} parent=1 // pred_check_branch
      %42 = sbr.rel (0) target = $region41
    $region40: #{tpu_custom_call.1} parent=1 // pred_region
      _
    $region41: #{tpu_custom_call.1} parent=1 // pred_fallthru
      _
    // Predicated region
    $region42: #{tpu_custom_call.1} parent=1 // pred_check
      _
    $region43: #{tpu_custom_call.1} parent=1 // pred_check_branch
      %44 = sbr.rel (0) target = $region45
    $region44: #{tpu_custom_call.1} parent=1 // pred_region
      _
    $region45: #{tpu_custom_call.1} parent=1 // pred_fallthru
      _
    // Predicated region
    $region46: #{tpu_custom_call.1} parent=1 // pred_check
      _
    $region47: #{tpu_custom_call.1} parent=1 // pred_check_branch
      %46 = sbr.rel (0) target = $region49
    $region48: #{tpu_custom_call.1} parent=1 // pred_region
      _
    $region49: #{tpu_custom_call.1} parent=1 // pred_fallthru
      _
    // Predicated region
    $region50: #{tpu_custom_call.1} parent=1 // pred_check
      _
    $region51: #{tpu_custom_call.1} parent=1 // pred_check_branch
      %48 = sbr.rel (0) target = $region53
    $region52: #{tpu_custom_call.1} parent=1 // pred_region
      _
    $region53: #{tpu_custom_call.1} parent=1 // pred_fallthru
      _
    // Predicated region
    $region54: #{tpu_custom_call.1} parent=1 // pred_check
      _
    $region55: #{tpu_custom_call.1} parent=1 // pred_check_branch
      %50 = sbr.rel (0) target = $region57
    $region56: #{tpu_custom_call.1} parent=1 // pred_region
      _
    $region57: #{tpu_custom_call.1} parent=1 // pred_fallthru
      _
    // Predicated region
    $region58: #{tpu_custom_call.1} parent=1 // pred_check
      _
    $region59: #{tpu_custom_call.1} parent=1 // pred_check_branch
      %52 = sbr.rel (0) target = $region61
    $region60: #{tpu_custom_call.1} parent=1 // pred_region
      _
    $region61: #{tpu_custom_call.1} parent=1 // pred_fallthru
      _
    %v53 = vld [vmem:[%s0] sm:$0x1]
    %v54 = vld [vmem:[%s1] sm:$0xff]
    %v55 = vld [vmem:[%s1 + $0x8] sm:$0xff]
    %v56 = vld [vmem:[%s1 + $0x10] sm:$0xff]
    %v57 = vld [vmem:[%s1 + $0x18] sm:$0xff]
    %v59 = vlaneseq
    %v60 = vshrl.u32 %v59, 7
    %v61 = vsub.s32 0, %v60
    %v62 = vrot.slane %v53, %v61
    %65 = vset.pattern.permute.xlu0 0
    %66 = vperm.xlu0 %65, %v54
    %v67 = vpop.permute.xlu0 %66
    %70 = vset.pattern.permute.xlu0 0
    %71 = vperm.xlu0 %70, %v55
    %v72 = vpop.permute.xlu0 %71
    %75 = vset.pattern.permute.xlu0 0
    %76 = vperm.xlu0 %75, %v56
    %v77 = vpop.permute.xlu0 %76
    %80 = vset.pattern.permute.xlu0 0
    %81 = vperm.xlu0 %80, %v57
    %v82 = vpop.permute.xlu0 %81
    %v84 = vmul.f32 %v62, %v67
    %v85 = vmul.f32 %v62, %v72
    %v86 = vmul.f32 %v62, %v77
    %v87 = vmul.f32 %v62, %v82
    %v88 = vld [vmem:[%s2] sm:$0xff]
    %v89 = vld [vmem:[%s2 + $0x8] sm:$0xff]
    %v90 = vld [vmem:[%s2 + $0x10] sm:$0xff]
    %v91 = vld [vmem:[%s2 + $0x18] sm:$0xff]
    %93 = vset.pattern.permute.xlu0 0
    %94 = vperm.xlu0 %93, %v88
    %v95 = vpop.permute.xlu0 %94
    %98 = vset.pattern.permute.xlu0 0
    %99 = vperm.xlu0 %98, %v89
    %v100 = vpop.permute.xlu0 %99
    %103 = vset.pattern.permute.xlu0 0
    %104 = vperm.xlu0 %103, %v90
    %v105 = vpop.permute.xlu0 %104
    %108 = vset.pattern.permute.xlu0 0
    %109 = vperm.xlu0 %108, %v91
    %v110 = vpop.permute.xlu0 %109
    %v112 = vadd.f32 %v84, %v95
    %v113 = vadd.f32 %v85, %v100
    %v114 = vadd.f32 %v86, %v105
    %v115 = vadd.f32 %v87, %v110
    %v116 = vand.u32 2147483647, %v112
    %vm117 = vcmp.le.f32.partialorder %v116, 0.7853982
    %vm118 = vcmp.lt.s32.totalorder %v112, 0
    %v119 = vand.u32 %v112, 2139095040
    %v120 = vshrl.u32 %v119, 23
    %v121 = vsub.s32 %v120, 127
    %v122 = vand.u32 2147483647, %v112
    %v123 = vand.u32 %v122, 8388607
    %v124 = vor.u32 %v123, 8388608
    %v125 = vsub.s32 0, %v124
    %v126 = vadd.s32 %v121, 1
    %vm127 = vcmp.gt.s32.totalorder %v126, 0
    %v128 = vsel %vm127, %v126, 0
    %v129 = vshrl.u32 %v128, 5
    %v130 = vand.u32 %v128, 31
    %v131 = vsub.s32 32, %v130
    %v132 = vshrl.u32 683565275, %v131
    %v133 = vshll.u32 683565275, %v130
    %v134 = vshrl.u32 2475754826, %v131
    %v135 = vor.u32 %v133, %v134
    %v136 = vshll.u32 2475754826, %v130
    %v137 = vshrl.u32 2131351028, %v131
    %v138 = vor.u32 %v136, %v137
    %v139 = vshll.u32 2131351028, %v130
    %v140 = vshrl.u32 2102212464, %v131
    %v141 = vor.u32 %v139, %v140
    %v142 = vshll.u32 2102212464, %v130
    %v143 = vshrl.u32 920167782, %v131
    %v144 = vor.u32 %v142, %v143
    %v145 = vshll.u32 920167782, %v130
    %v146 = vshrl.u32 1326507024, %v131
    %v147 = vor.u32 %v145, %v146
    %vm148 = vcmp.lt.s32.totalorder %v129, 1
    %vm149 = vcmp.lt.s32.totalorder %v129, 2
    %vm150 = vcmp.lt.s32.totalorder %v129, 3
    %vm151 = vcmp.lt.s32.totalorder %v129, 4
    %v152 = vsel %vm148, %v132, %v135
    %v153 = vsel %vm151, %v141, 2102212464
    %v154 = vsel %vm150, %v138, %v153
    %v155 = vsel %vm149, %v152, %v154
    %v156 = vsel %vm148, %v135, %v138
    %v157 = vsel %vm151, %v144, 920167782
    %v158 = vsel %vm150, %v141, %v157
    %v159 = vsel %vm149, %v156, %v158
    %v160 = vsel %vm148, %v138, %v141
    %v161 = vsel %vm151, %v147, 1326507024
    %v162 = vsel %vm150, %v144, %v161
    %v163 = vsel %vm149, %v160, %v162
    %v164 = vshll.u32 %v124, 8
    %v165 = vmul.u32.u64.compose %v164, %v163
    %v166 = vextract.low.u32 %v165
    %v167 = vextract.high.u32 %v165
    %v168 = vmul.u32.u64.compose %v164, %v159
    %v169 = vextract.low.u32 %v168
    %v170 = vextract.high.u32 %v168
    %v171 = vmul.u32 %v164, %v155
    %v172 = vadd.s32 %v167, %v169
    %vm173 = vc.u32 %v167, %v169
    %v174 = vadd.s32 %v170, 1
    %v175 = vsel %vm173, %v174, %v170
    %v176 = vadd.s32 %v171, %v175
    %v177 = vadd.s32 %v176, 536870912
    %v178 = vshrl.u32 %v177, 30
    %v179 = vshll.u32 %v178, 30
    %v180 = vsub.s32 %v176, %v179
    %vm181 = vcmp.lt.s32.totalorder %v180, 0
    %v182 = vsub.s32 0, %v180
    %v183 = vsel %vm181, %v182, %v180
    %v184 = vclz %v183
    %v185 = vsub.s32 %v184, 2
    %vm186 = vcmp.gt.s32.totalorder 0, %v185
    %v187 = vsel %vm186, 0, %v185
    %v188 = vsub.s32 32, %v187
    %v189 = vshll.u32 %v180, %v187
    %v190 = vshrl.u32 %v172, %v188
    %v191 = vor.u32 %v189, %v190
    %v192 = vsub.s32 4294967266, %v187
    %v193 = vadd.s32 %v192, 127
    %v194 = vshll.u32 %v193, 23
    %v195 = vor.u32 4788187, %v194
    %v196 = vand.u32 2147483647, %v195
    %v198 = vcvt.s32.f32 %v191
    %v199 = vmul.f32 %v198, %v196
    %v200 = vxor.u32 %v199, 2147483648
    %v201 = vsel %vm118, %v200, %v199
    %v202 = vsub.s32 4, %v178
    %v203 = vsel %vm118, %v202, %v178
    %v204 = vsel %vm117, %v112, %v201
    %v205 = vsel %vm117, 0, %v203
    %v206 = vcosq.f32.pop %v204
    %v207 = vsinq.f32.pop %v204
    %vm208 = vweird.f32 %v112
    %v209 = vadd.s32 %v205, 3
    %v210 = vand.u32 %v209, 3
    %vm211 = vcmp.lt.s32.totalorder %v210, 2
    %vm212 = vcmp.eq.s32.totalorder %v210, 0
    %v213 = vxor.u32 %v207, 2147483648
    %v214 = vsel %vm212, %v206, %v213
    %vm215 = vcmp.eq.s32.totalorder %v210, 2
    %v216 = vxor.u32 %v206, 2147483648
    %v217 = vsel %vm215, %v216, %v207
    %v218 = vsel %vm211, %v214, %v217
    %v219 = vsel %vm208, nan, %v218
    %v220 = vand.u32 2147483647, %v113
    %vm221 = vcmp.le.f32.partialorder %v220, 0.7853982
    %vm222 = vcmp.lt.s32.totalorder %v113, 0
    %v223 = vand.u32 %v113, 2139095040
    %v224 = vshrl.u32 %v223, 23
    %v225 = vsub.s32 %v224, 127
    %v226 = vand.u32 2147483647, %v113
    %v227 = vand.u32 %v226, 8388607
    %v228 = vor.u32 %v227, 8388608
    %v229 = vsub.s32 0, %v228
    %v230 = vadd.s32 %v225, 1
    %vm231 = vcmp.gt.s32.totalorder %v230, 0
    %v232 = vsel %vm231, %v230, 0
    %v233 = vshrl.u32 %v232, 5
    %v234 = vand.u32 %v232, 31
    %v235 = vsub.s32 32, %v234
    %v236 = vshrl.u32 683565275, %v235
    %v237 = vshll.u32 683565275, %v234
    %v238 = vshrl.u32 2475754826, %v235
    %v239 = vor.u32 %v237, %v238
    %v240 = vshll.u32 2475754826, %v234
    %v241 = vshrl.u32 2131351028, %v235
    %v242 = vor.u32 %v240, %v241
    %v243 = vshll.u32 2131351028, %v234
    %v244 = vshrl.u32 2102212464, %v235
    %v245 = vor.u32 %v243, %v244
    %v246 = vshll.u32 2102212464, %v234
    %v247 = vshrl.u32 920167782, %v235
    %v248 = vor.u32 %v246, %v247
    %v249 = vshll.u32 920167782, %v234
    %v250 = vshrl.u32 1326507024, %v235
    %v251 = vor.u32 %v249, %v250
    %vm252 = vcmp.lt.s32.totalorder %v233, 1
    %vm253 = vcmp.lt.s32.totalorder %v233, 2
    %vm254 = vcmp.lt.s32.totalorder %v233, 3
    %vm255 = vcmp.lt.s32.totalorder %v233, 4
    %v256 = vsel %vm252, %v236, %v239
    %v257 = vsel %vm255, %v245, 2102212464
    %v258 = vsel %vm254, %v242, %v257
    %v259 = vsel %vm253, %v256, %v258
    %v260 = vsel %vm252, %v239, %v242
    %v261 = vsel %vm255, %v248, 920167782
    %v262 = vsel %vm254, %v245, %v261
    %v263 = vsel %vm253, %v260, %v262
    %v264 = vsel %vm252, %v242, %v245
    %v265 = vsel %vm255, %v251, 1326507024
    %v266 = vsel %vm254, %v248, %v265
    %v267 = vsel %vm253, %v264, %v266
    %v268 = vshll.u32 %v228, 8
    %v269 = vmul.u32.u64.compose %v268, %v267
    %v270 = vextract.low.u32 %v269
    %v271 = vextract.high.u32 %v269
    %v272 = vmul.u32.u64.compose %v268, %v263
    %v273 = vextract.low.u32 %v272
    %v274 = vextract.high.u32 %v272
    %v275 = vmul.u32 %v268, %v259
    %v276 = vadd.s32 %v271, %v273
    %vm277 = vc.u32 %v271, %v273
    %v278 = vadd.s32 %v274, 1
    %v279 = vsel %vm277, %v278, %v274
    %v280 = vadd.s32 %v275, %v279
    %v281 = vadd.s32 %v280, 536870912
    %v282 = vshrl.u32 %v281, 30
    %v283 = vshll.u32 %v282, 30
    %v284 = vsub.s32 %v280, %v283
    %vm285 = vcmp.lt.s32.totalorder %v284, 0
    %v286 = vsub.s32 0, %v284
    %v287 = vsel %vm285, %v286, %v284
    %v288 = vclz %v287
    %v289 = vsub.s32 %v288, 2
    %vm290 = vcmp.gt.s32.totalorder 0, %v289
    %v291 = vsel %vm290, 0, %v289
    %v292 = vsub.s32 32, %v291
    %v293 = vshll.u32 %v284, %v291
    %v294 = vshrl.u32 %v276, %v292
    %v295 = vor.u32 %v293, %v294
    %v296 = vsub.s32 4294967266, %v291
    %v297 = vadd.s32 %v296, 127
    %v298 = vshll.u32 %v297, 23
    %v299 = vor.u32 4788187, %v298
    %v300 = vand.u32 2147483647, %v299
    %v302 = vcvt.s32.f32 %v295
    %v303 = vmul.f32 %v302, %v300
    %v304 = vxor.u32 %v303, 2147483648
    %v305 = vsel %vm222, %v304, %v303
    %v306 = vsub.s32 4, %v282
    %v307 = vsel %vm222, %v306, %v282
    %v308 = vsel %vm221, %v113, %v305
    %v309 = vsel %vm221, 0, %v307
    %v310 = vcosq.f32.pop %v308
    %v311 = vsinq.f32.pop %v308
    %vm312 = vweird.f32 %v113
    %v313 = vadd.s32 %v309, 3
    %v314 = vand.u32 %v313, 3
    %vm315 = vcmp.lt.s32.totalorder %v314, 2
    %vm316 = vcmp.eq.s32.totalorder %v314, 0
    %v317 = vxor.u32 %v311, 2147483648
    %v318 = vsel %vm316, %v310, %v317
    %vm319 = vcmp.eq.s32.totalorder %v314, 2
    %v320 = vxor.u32 %v310, 2147483648
    %v321 = vsel %vm319, %v320, %v311
    %v322 = vsel %vm315, %v318, %v321
    %v323 = vsel %vm312, nan, %v322
    %v324 = vand.u32 2147483647, %v114
    %vm325 = vcmp.le.f32.partialorder %v324, 0.7853982
    %vm326 = vcmp.lt.s32.totalorder %v114, 0
    %v327 = vand.u32 %v114, 2139095040
    %v328 = vshrl.u32 %v327, 23
    %v329 = vsub.s32 %v328, 127
    %v330 = vand.u32 2147483647, %v114
    %v331 = vand.u32 %v330, 8388607
    %v332 = vor.u32 %v331, 8388608
    %v333 = vsub.s32 0, %v332
    %v334 = vadd.s32 %v329, 1
    %vm335 = vcmp.gt.s32.totalorder %v334, 0
    %v336 = vsel %vm335, %v334, 0
    %v337 = vshrl.u32 %v336, 5
    %v338 = vand.u32 %v336, 31
    %v339 = vsub.s32 32, %v338
    %v340 = vshrl.u32 683565275, %v339
    %v341 = vshll.u32 683565275, %v338
    %v342 = vshrl.u32 2475754826, %v339
    %v343 = vor.u32 %v341, %v342
    %v344 = vshll.u32 2475754826, %v338
    %v345 = vshrl.u32 2131351028, %v339
    %v346 = vor.u32 %v344, %v345
    %v347 = vshll.u32 2131351028, %v338
    %v348 = vshrl.u32 2102212464, %v339
    %v349 = vor.u32 %v347, %v348
    %v350 = vshll.u32 2102212464, %v338
    %v351 = vshrl.u32 920167782, %v339
    %v352 = vor.u32 %v350, %v351
    %v353 = vshll.u32 920167782, %v338
    %v354 = vshrl.u32 1326507024, %v339
    %v355 = vor.u32 %v353, %v354
    %vm356 = vcmp.lt.s32.totalorder %v337, 1
    %vm357 = vcmp.lt.s32.totalorder %v337, 2
    %vm358 = vcmp.lt.s32.totalorder %v337, 3
    %vm359 = vcmp.lt.s32.totalorder %v337, 4
    %v360 = vsel %vm356, %v340, %v343
    %v361 = vsel %vm359, %v349, 2102212464
    %v362 = vsel %vm358, %v346, %v361
    %v363 = vsel %vm357, %v360, %v362
    %v364 = vsel %vm356, %v343, %v346
    %v365 = vsel %vm359, %v352, 920167782
    %v366 = vsel %vm358, %v349, %v365
    %v367 = vsel %vm357, %v364, %v366
    %v368 = vsel %vm356, %v346, %v349
    %v369 = vsel %vm359, %v355, 1326507024
    %v370 = vsel %vm358, %v352, %v369
    %v371 = vsel %vm357, %v368, %v370
    %v372 = vshll.u32 %v332, 8
    %v373 = vmul.u32.u64.compose %v372, %v371
    %v374 = vextract.low.u32 %v373
    %v375 = vextract.high.u32 %v373
    %v376 = vmul.u32.u64.compose %v372, %v367
    %v377 = vextract.low.u32 %v376
    %v378 = vextract.high.u32 %v376
    %v379 = vmul.u32 %v372, %v363
    %v380 = vadd.s32 %v375, %v377
    %vm381 = vc.u32 %v375, %v377
    %v382 = vadd.s32 %v378, 1
    %v383 = vsel %vm381, %v382, %v378
    %v384 = vadd.s32 %v379, %v383
    %v385 = vadd.s32 %v384, 536870912
    %v386 = vshrl.u32 %v385, 30
    %v387 = vshll.u32 %v386, 30
    %v388 = vsub.s32 %v384, %v387
    %vm389 = vcmp.lt.s32.totalorder %v388, 0
    %v390 = vsub.s32 0, %v388
    %v391 = vsel %vm389, %v390, %v388
    %v392 = vclz %v391
    %v393 = vsub.s32 %v392, 2
    %vm394 = vcmp.gt.s32.totalorder 0, %v393
    %v395 = vsel %vm394, 0, %v393
    %v396 = vsub.s32 32, %v395
    %v397 = vshll.u32 %v388, %v395
    %v398 = vshrl.u32 %v380, %v396
    %v399 = vor.u32 %v397, %v398
    %v400 = vsub.s32 4294967266, %v395
    %v401 = vadd.s32 %v400, 127
    %v402 = vshll.u32 %v401, 23
    %v403 = vor.u32 4788187, %v402
    %v404 = vand.u32 2147483647, %v403
    %v406 = vcvt.s32.f32 %v399
    %v407 = vmul.f32 %v406, %v404
    %v408 = vxor.u32 %v407, 2147483648
    %v409 = vsel %vm326, %v408, %v407
    %v410 = vsub.s32 4, %v386
    %v411 = vsel %vm326, %v410, %v386
    %v412 = vsel %vm325, %v114, %v409
    %v413 = vsel %vm325, 0, %v411
    %v414 = vcosq.f32.pop %v412
    %v415 = vsinq.f32.pop %v412
    %vm416 = vweird.f32 %v114
    %v417 = vadd.s32 %v413, 3
    %v418 = vand.u32 %v417, 3
    %vm419 = vcmp.lt.s32.totalorder %v418, 2
    %vm420 = vcmp.eq.s32.totalorder %v418, 0
    %v421 = vxor.u32 %v415, 2147483648
    %v422 = vsel %vm420, %v414, %v421
    %vm423 = vcmp.eq.s32.totalorder %v418, 2
    %v424 = vxor.u32 %v414, 2147483648
    %v425 = vsel %vm423, %v424, %v415
    %v426 = vsel %vm419, %v422, %v425
    %v427 = vsel %vm416, nan, %v426
    %v428 = vand.u32 2147483647, %v115
    %vm429 = vcmp.le.f32.partialorder %v428, 0.7853982
    %vm430 = vcmp.lt.s32.totalorder %v115, 0
    %v431 = vand.u32 %v115, 2139095040
    %v432 = vshrl.u32 %v431, 23
    %v433 = vsub.s32 %v432, 127
    %v434 = vand.u32 2147483647, %v115
    %v435 = vand.u32 %v434, 8388607
    %v436 = vor.u32 %v435, 8388608
    %v437 = vsub.s32 0, %v436
    %v438 = vadd.s32 %v433, 1
    %vm439 = vcmp.gt.s32.totalorder %v438, 0
    %v440 = vsel %vm439, %v438, 0
    %v441 = vshrl.u32 %v440, 5
    %v442 = vand.u32 %v440, 31
    %v443 = vsub.s32 32, %v442
    %v444 = vshrl.u32 683565275, %v443
    %v445 = vshll.u32 683565275, %v442
    %v446 = vshrl.u32 2475754826, %v443
    %v447 = vor.u32 %v445, %v446
    %v448 = vshll.u32 2475754826, %v442
    %v449 = vshrl.u32 2131351028, %v443
    %v450 = vor.u32 %v448, %v449
    %v451 = vshll.u32 2131351028, %v442
    %v452 = vshrl.u32 2102212464, %v443
    %v453 = vor.u32 %v451, %v452
    %v454 = vshll.u32 2102212464, %v442
    %v455 = vshrl.u32 920167782, %v443
    %v456 = vor.u32 %v454, %v455
    %v457 = vshll.u32 920167782, %v442
    %v458 = vshrl.u32 1326507024, %v443
    %v459 = vor.u32 %v457, %v458
    %vm460 = vcmp.lt.s32.totalorder %v441, 1
    %vm461 = vcmp.lt.s32.totalorder %v441, 2
    %vm462 = vcmp.lt.s32.totalorder %v441, 3
    %vm463 = vcmp.lt.s32.totalorder %v441, 4
    %v464 = vsel %vm460, %v444, %v447
    %v465 = vsel %vm463, %v453, 2102212464
    %v466 = vsel %vm462, %v450, %v465
    %v467 = vsel %vm461, %v464, %v466
    %v468 = vsel %vm460, %v447, %v450
    %v469 = vsel %vm463, %v456, 920167782
    %v470 = vsel %vm462, %v453, %v469
    %v471 = vsel %vm461, %v468, %v470
    %v472 = vsel %vm460, %v450, %v453
    %v473 = vsel %vm463, %v459, 1326507024
    %v474 = vsel %vm462, %v456, %v473
    %v475 = vsel %vm461, %v472, %v474
    %v476 = vshll.u32 %v436, 8
    %v477 = vmul.u32.u64.compose %v476, %v475
    %v478 = vextract.low.u32 %v477
    %v479 = vextract.high.u32 %v477
    %v480 = vmul.u32.u64.compose %v476, %v471
    %v481 = vextract.low.u32 %v480
    %v482 = vextract.high.u32 %v480
    %v483 = vmul.u32 %v476, %v467
    %v484 = vadd.s32 %v479, %v481
    %vm485 = vc.u32 %v479, %v481
    %v486 = vadd.s32 %v482, 1
    %v487 = vsel %vm485, %v486, %v482
    %v488 = vadd.s32 %v483, %v487
    %v489 = vadd.s32 %v488, 536870912
    %v490 = vshrl.u32 %v489, 30
    %v491 = vshll.u32 %v490, 30
    %v492 = vsub.s32 %v488, %v491
    %vm493 = vcmp.lt.s32.totalorder %v492, 0
    %v494 = vsub.s32 0, %v492
    %v495 = vsel %vm493, %v494, %v492
    %v496 = vclz %v495
    %v497 = vsub.s32 %v496, 2
    %vm498 = vcmp.gt.s32.totalorder 0, %v497
    %v499 = vsel %vm498, 0, %v497
    %v500 = vsub.s32 32, %v499
    %v501 = vshll.u32 %v492, %v499
    %v502 = vshrl.u32 %v484, %v500
    %v503 = vor.u32 %v501, %v502
    %v504 = vsub.s32 4294967266, %v499
    %v505 = vadd.s32 %v504, 127
    %v506 = vshll.u32 %v505, 23
    %v507 = vor.u32 4788187, %v506
    %v508 = vand.u32 2147483647, %v507
    %v510 = vcvt.s32.f32 %v503
    %v511 = vmul.f32 %v510, %v508
    %v512 = vxor.u32 %v511, 2147483648
    %v513 = vsel %vm430, %v512, %v511
    %v514 = vsub.s32 4, %v490
    %v515 = vsel %vm430, %v514, %v490
    %v516 = vsel %vm429, %v115, %v513
    %v517 = vsel %vm429, 0, %v515
    %v518 = vcosq.f32.pop %v516
    %v519 = vsinq.f32.pop %v516
    %vm520 = vweird.f32 %v115
    %v521 = vadd.s32 %v517, 3
    %v522 = vand.u32 %v521, 3
    %vm523 = vcmp.lt.s32.totalorder %v522, 2
    %vm524 = vcmp.eq.s32.totalorder %v522, 0
    %v525 = vxor.u32 %v519, 2147483648
    %v526 = vsel %vm524, %v518, %v525
    %vm527 = vcmp.eq.s32.totalorder %v522, 2
    %v528 = vxor.u32 %v518, 2147483648
    %v529 = vsel %vm527, %v528, %v519
    %v530 = vsel %vm523, %v526, %v529
    %v531 = vsel %vm520, nan, %v530
    %v532 = vld [vmem:[%s3] sm:$0xff]
    %v533 = vld [vmem:[%s3 + $0x8] sm:$0xff]
    %v534 = vld [vmem:[%s3 + $0x10] sm:$0xff]
    %v535 = vld [vmem:[%s3 + $0x18] sm:$0xff]
    %v536 = vld [vmem:[%s8] sm:$0xff]
    %v537 = vld [vmem:[%s8 + $0x8] sm:$0xff]
    %v538 = vld [vmem:[%s8 + $0x10] sm:$0xff]
    %v539 = vld [vmem:[%s8 + $0x18] sm:$0xff]
    %541 = vset.pattern.permute.xlu0 0
    %542 = vperm.xlu0 %541, %v536
    %v543 = vpop.permute.xlu0 %542
    %546 = vset.pattern.permute.xlu0 0
    %547 = vperm.xlu0 %546, %v537
    %v548 = vpop.permute.xlu0 %547
    %551 = vset.pattern.permute.xlu0 0
    %552 = vperm.xlu0 %551, %v538
    %v553 = vpop.permute.xlu0 %552
    %556 = vset.pattern.permute.xlu0 0
    %557 = vperm.xlu0 %556, %v539
    %v558 = vpop.permute.xlu0 %557
    %vm560 = vcmask 261120
    %v562 = vsel %vm560, %v532, 0
    %v565 = vsel %vm560, %v533, 0
    %v568 = vsel %vm560, %v534, 0
    %v571 = vsel %vm560, %v535, 0
    %573 = vmatprep.subr.mxu0 0.0
    %574 = vmatpush1.msra.mxu0 %v219
    %575 = vmatprep.subr.mxu0 0.0
    %576 = vmatpush1.msra.mxu0 %v323
    %577 = vmatprep.subr.mxu0 0.0
    %578 = vmatpush1.msra.mxu0 %v427
    %579 = vmatprep.subr.mxu0 0.0
    %580 = vmatpush1.msra.mxu0 %v531
    %581 = vmatprep.subr.mxu0 0.0
    %582 = vmatpush1.msra.mxu0 0.0
    %583 = vmatprep.subr.mxu0 0.0
    %584 = vmatpush1.msra.mxu0 0.0
    %585 = vmatprep.subr.mxu0 0.0
    %586 = vmatpush1.msra.mxu0 0.0
    %587 = vmatprep.subr.mxu0 0.0
    %588 = vmatpush1.msra.mxu0 0.0
    %589 = vmatprep.subr.mxu0 0.0
    %590 = vmatpush1.msra.mxu0 0.0
    %591 = vmatprep.subr.mxu0 0.0
    %592 = vmatpush1.msra.mxu0 0.0
    %593 = vmatprep.subr.mxu0 0.0
    %594 = vmatpush1.msra.mxu0 0.0
    %595 = vmatprep.subr.mxu0 0.0
    %596 = vmatpush1.msra.mxu0 0.0
    %597 = vmatprep.subr.mxu0 0.0
    %598 = vmatpush1.msra.mxu0 0.0
    %599 = vmatprep.subr.mxu0 0.0
    %600 = vmatpush1.msra.mxu0 0.0
    %601 = vmatprep.subr.mxu0 0.0
    %602 = vmatpush1.msra.mxu0 0.0
    %603 = vmatprep.subr.mxu0 0.0
    %604 = vmatpush1.msra.mxu0 0.0
    %605 = vmatprep.subr.mxu0 0.0
    %606 = vmatpush1.msra.mxu0 0.0
    %607 = vmatprep.subr.mxu0 0.0
    %608 = vmatpush1.msra.mxu0 0.0
    %609 = vmatprep.subr.mxu0 0.0
    %610 = vmatpush1.msra.mxu0 0.0
    %611 = vmatprep.subr.mxu0 0.0
    %612 = vmatpush1.msra.mxu0 0.0
    %613 = vmatprep.subr.mxu0 0.0
    %614 = vmatpush1.msra.mxu0 0.0
    %615 = vmatprep.subr.mxu0 0.0
    %616 = vmatpush1.msra.mxu0 0.0
    %617 = vmatprep.subr.mxu0 0.0
    %618 = vmatpush1.msra.mxu0 0.0
    %619 = vmatprep.subr.mxu0 0.0
    %620 = vmatpush1.msra.mxu0 0.0
    %621 = vmatprep.subr.mxu0 0.0
    %622 = vmatpush1.msra.mxu0 0.0
    %623 = vmatprep.subr.mxu0 0.0
    %624 = vmatpush1.msra.mxu0 0.0
    %625 = vmatprep.subr.mxu0 0.0
    %626 = vmatpush1.msra.mxu0 0.0
    %627 = vmatprep.subr.mxu0 0.0
    %628 = vmatpush1.msra.mxu0 0.0
    %629 = vmatprep.subr.mxu0 0.0
    %630 = vmatpush1.msra.mxu0 0.0
    %631 = vmatprep.subr.mxu0 0.0
    %632 = vmatpush1.msra.mxu0 0.0
    %633 = vmatprep.subr.mxu0 0.0
    %634 = vmatpush1.msra.mxu0 0.0
    %635 = vmatprep.subr.mxu0 0.0
    %636 = vmatpush1.msra.mxu0 0.0
    %637 = vmatprep.mubr.f32.mxu0 0.0
    %638 = vmatmul.mubr.f32.gmra.mrb[0].mxu0 %v562
    %v639 = vpop.f32.mrb[0].mxu0
    %v640 = vadd.f32 %v543, %v639
    %v641 = vpop.f32.mrb[0].mxu0
    %642 = vmatprep.mubr.f32.mxu0 0.0
    %643 = vmatmul.mubr.f32.gmra.mrb[0].mxu0 %v565
    %v644 = vpop.f32.mrb[0].mxu0
    %v645 = vadd.f32 %v548, %v644
    %v646 = vpop.f32.mrb[0].mxu0
    %647 = vmatprep.mubr.f32.mxu0 0.0
    %648 = vmatmul.mubr.f32.gmra.mrb[0].mxu0 %v568
    %v649 = vpop.f32.mrb[0].mxu0
    %v650 = vadd.f32 %v553, %v649
    %v651 = vpop.f32.mrb[0].mxu0
    %652 = vmatprep.mubr.f32.mxu0 0.0
    %653 = vmatmul.mubr.f32.gmra.mrb[0].mxu0 %v571
    %v654 = vpop.f32.mrb[0].mxu0
    %v655 = vadd.f32 %v558, %v654
    %v656 = vpop.f32.mrb[0].mxu0
    %657 = vdwg.mxu0
    %v658 = vtanh.pop %v640
    %v659 = vtanh.pop %v645
    %v660 = vtanh.pop %v650
    %v661 = vtanh.pop %v655
    %v662 = vld [vmem:[%s4] sm:$0xff]
    %v663 = vld [vmem:[%s4 + $0x8] sm:$0xff]
    %v664 = vld [vmem:[%s4 + $0x10] sm:$0xff]
    %v665 = vld [vmem:[%s4 + $0x18] sm:$0xff]
    %v666 = vld [vmem:[%s9] sm:$0xff]
    %v667 = vld [vmem:[%s9 + $0x8] sm:$0xff]
    %v668 = vld [vmem:[%s9 + $0x10] sm:$0xff]
    %v669 = vld [vmem:[%s9 + $0x18] sm:$0xff]
    %671 = vset.pattern.permute.xlu0 0
    %672 = vperm.xlu0 %671, %v666
    %v673 = vpop.permute.xlu0 %672
    %676 = vset.pattern.permute.xlu0 0
    %677 = vperm.xlu0 %676, %v667
    %v678 = vpop.permute.xlu0 %677
    %681 = vset.pattern.permute.xlu0 0
    %682 = vperm.xlu0 %681, %v668
    %v683 = vpop.permute.xlu0 %682
    %686 = vset.pattern.permute.xlu0 0
    %687 = vperm.xlu0 %686, %v669
    %v688 = vpop.permute.xlu0 %687
    %v691 = vsel %vm560, %v662, 0
    %v694 = vsel %vm560, %v663, 0
    %v697 = vsel %vm560, %v664, 0
    %v700 = vsel %vm560, %v665, 0
    %702 = vmatprep.subr.mxu0 0.0
    %703 = vmatpush1.msra.mxu0 %v658
    %704 = vmatprep.subr.mxu0 0.0
    %705 = vmatpush1.msra.mxu0 %v659
    %706 = vmatprep.subr.mxu0 0.0
    %707 = vmatpush1.msra.mxu0 %v660
    %708 = vmatprep.subr.mxu0 0.0
    %709 = vmatpush1.msra.mxu0 %v661
    %710 = vmatprep.subr.mxu0 0.0
    %711 = vmatpush1.msra.mxu0 0.0
    %712 = vmatprep.subr.mxu0 0.0
    %713 = vmatpush1.msra.mxu0 0.0
    %714 = vmatprep.subr.mxu0 0.0
    %715 = vmatpush1.msra.mxu0 0.0
    %716 = vmatprep.subr.mxu0 0.0
    %717 = vmatpush1.msra.mxu0 0.0
    %718 = vmatprep.subr.mxu0 0.0
    %719 = vmatpush1.msra.mxu0 0.0
    %720 = vmatprep.subr.mxu0 0.0
    %721 = vmatpush1.msra.mxu0 0.0
    %722 = vmatprep.subr.mxu0 0.0
    %723 = vmatpush1.msra.mxu0 0.0
    %724 = vmatprep.subr.mxu0 0.0
    %725 = vmatpush1.msra.mxu0 0.0
    %726 = vmatprep.subr.mxu0 0.0
    %727 = vmatpush1.msra.mxu0 0.0
    %728 = vmatprep.subr.mxu0 0.0
    %729 = vmatpush1.msra.mxu0 0.0
    %730 = vmatprep.subr.mxu0 0.0
    %731 = vmatpush1.msra.mxu0 0.0
    %732 = vmatprep.subr.mxu0 0.0
    %733 = vmatpush1.msra.mxu0 0.0
    %734 = vmatprep.subr.mxu0 0.0
    %735 = vmatpush1.msra.mxu0 0.0
    %736 = vmatprep.subr.mxu0 0.0
    %737 = vmatpush1.msra.mxu0 0.0
    %738 = vmatprep.subr.mxu0 0.0
    %739 = vmatpush1.msra.mxu0 0.0
    %740 = vmatprep.subr.mxu0 0.0
    %741 = vmatpush1.msra.mxu0 0.0
    %742 = vmatprep.subr.mxu0 0.0
    %743 = vmatpush1.msra.mxu0 0.0
    %744 = vmatprep.subr.mxu0 0.0
    %745 = vmatpush1.msra.mxu0 0.0
    %746 = vmatprep.subr.mxu0 0.0
    %747 = vmatpush1.msra.mxu0 0.0
    %748 = vmatprep.subr.mxu0 0.0
    %749 = vmatpush1.msra.mxu0 0.0
    %750 = vmatprep.subr.mxu0 0.0
    %751 = vmatpush1.msra.mxu0 0.0
    %752 = vmatprep.subr.mxu0 0.0
    %753 = vmatpush1.msra.mxu0 0.0
    %754 = vmatprep.subr.mxu0 0.0
    %755 = vmatpush1.msra.mxu0 0.0
    %756 = vmatprep.subr.mxu0 0.0
    %757 = vmatpush1.msra.mxu0 0.0
    %758 = vmatprep.subr.mxu0 0.0
    %759 = vmatpush1.msra.mxu0 0.0
    %760 = vmatprep.subr.mxu0 0.0
    %761 = vmatpush1.msra.mxu0 0.0
    %762 = vmatprep.subr.mxu0 0.0
    %763 = vmatpush1.msra.mxu0 0.0
    %764 = vmatprep.subr.mxu0 0.0
    %765 = vmatpush1.msra.mxu0 0.0
    %766 = vmatprep.mubr.f32.mxu0 0.0
    %767 = vmatmul.mubr.f32.gmra.mrb[0].mxu0 %v691
    %v768 = vpop.f32.mrb[0].mxu0
    %v769 = vadd.f32 %v673, %v768
    %v770 = vpop.f32.mrb[0].mxu0
    %771 = vmatprep.mubr.f32.mxu0 0.0
    %772 = vmatmul.mubr.f32.gmra.mrb[0].mxu0 %v694
    %v773 = vpop.f32.mrb[0].mxu0
    %v774 = vadd.f32 %v678, %v773
    %v775 = vpop.f32.mrb[0].mxu0
    %776 = vmatprep.mubr.f32.mxu0 0.0
    %777 = vmatmul.mubr.f32.gmra.mrb[0].mxu0 %v697
    %v778 = vpop.f32.mrb[0].mxu0
    %v779 = vadd.f32 %v683, %v778
    %v780 = vpop.f32.mrb[0].mxu0
    %781 = vmatprep.mubr.f32.mxu0 0.0
    %782 = vmatmul.mubr.f32.gmra.mrb[0].mxu0 %v700
    %v783 = vpop.f32.mrb[0].mxu0
    %v784 = vadd.f32 %v688, %v783
    %v785 = vpop.f32.mrb[0].mxu0
    %786 = vdwg.mxu0
    %v787 = vtanh.pop %v769
    %v788 = vtanh.pop %v774
    %v789 = vtanh.pop %v779
    %v790 = vtanh.pop %v784
    %v791 = vld [vmem:[%s5] sm:$0xff]
    %v792 = vld [vmem:[%s5 + $0x8] sm:$0xff]
    %v793 = vld [vmem:[%s5 + $0x10] sm:$0xff]
    %v794 = vld [vmem:[%s5 + $0x18] sm:$0xff]
    %v795 = vld [vmem:[%s10] sm:$0xff]
    %v796 = vld [vmem:[%s10 + $0x8] sm:$0xff]
    %v797 = vld [vmem:[%s10 + $0x10] sm:$0xff]
    %v798 = vld [vmem:[%s10 + $0x18] sm:$0xff]
    %800 = vset.pattern.permute.xlu0 0
    %801 = vperm.xlu0 %800, %v795
    %v802 = vpop.permute.xlu0 %801
    %805 = vset.pattern.permute.xlu0 0
    %806 = vperm.xlu0 %805, %v796
    %v807 = vpop.permute.xlu0 %806
    %810 = vset.pattern.permute.xlu0 0
    %811 = vperm.xlu0 %810, %v797
    %v812 = vpop.permute.xlu0 %811
    %815 = vset.pattern.permute.xlu0 0
    %816 = vperm.xlu0 %815, %v798
    %v817 = vpop.permute.xlu0 %816
    %v820 = vsel %vm560, %v791, 0
    %v823 = vsel %vm560, %v792, 0
    %v826 = vsel %vm560, %v793, 0
    %v829 = vsel %vm560, %v794, 0
    %831 = vmatprep.subr.mxu0 0.0
    %832 = vmatpush1.msra.mxu0 %v787
    %833 = vmatprep.subr.mxu0 0.0
    %834 = vmatpush1.msra.mxu0 %v788
    %835 = vmatprep.subr.mxu0 0.0
    %836 = vmatpush1.msra.mxu0 %v789
    %837 = vmatprep.subr.mxu0 0.0
    %838 = vmatpush1.msra.mxu0 %v790
    %839 = vmatprep.subr.mxu0 0.0
    %840 = vmatpush1.msra.mxu0 0.0
    %841 = vmatprep.subr.mxu0 0.0
    %842 = vmatpush1.msra.mxu0 0.0
    %843 = vmatprep.subr.mxu0 0.0
    %844 = vmatpush1.msra.mxu0 0.0
    %845 = vmatprep.subr.mxu0 0.0
    %846 = vmatpush1.msra.mxu0 0.0
    %847 = vmatprep.subr.mxu0 0.0
    %848 = vmatpush1.msra.mxu0 0.0
    %849 = vmatprep.subr.mxu0 0.0
    %850 = vmatpush1.msra.mxu0 0.0
    %851 = vmatprep.subr.mxu0 0.0
    %852 = vmatpush1.msra.mxu0 0.0
    %853 = vmatprep.subr.mxu0 0.0
    %854 = vmatpush1.msra.mxu0 0.0
    %855 = vmatprep.subr.mxu0 0.0
    %856 = vmatpush1.msra.mxu0 0.0
    %857 = vmatprep.subr.mxu0 0.0
    %858 = vmatpush1.msra.mxu0 0.0
    %859 = vmatprep.subr.mxu0 0.0
    %860 = vmatpush1.msra.mxu0 0.0
    %861 = vmatprep.subr.mxu0 0.0
    %862 = vmatpush1.msra.mxu0 0.0
    %863 = vmatprep.subr.mxu0 0.0
    %864 = vmatpush1.msra.mxu0 0.0
    %865 = vmatprep.subr.mxu0 0.0
    %866 = vmatpush1.msra.mxu0 0.0
    %867 = vmatprep.subr.mxu0 0.0
    %868 = vmatpush1.msra.mxu0 0.0
    %869 = vmatprep.subr.mxu0 0.0
    %870 = vmatpush1.msra.mxu0 0.0
    %871 = vmatprep.subr.mxu0 0.0
    %872 = vmatpush1.msra.mxu0 0.0
    %873 = vmatprep.subr.mxu0 0.0
    %874 = vmatpush1.msra.mxu0 0.0
    %875 = vmatprep.subr.mxu0 0.0
    %876 = vmatpush1.msra.mxu0 0.0
    %877 = vmatprep.subr.mxu0 0.0
    %878 = vmatpush1.msra.mxu0 0.0
    %879 = vmatprep.subr.mxu0 0.0
    %880 = vmatpush1.msra.mxu0 0.0
    %881 = vmatprep.subr.mxu0 0.0
    %882 = vmatpush1.msra.mxu0 0.0
    %883 = vmatprep.subr.mxu0 0.0
    %884 = vmatpush1.msra.mxu0 0.0
    %885 = vmatprep.subr.mxu0 0.0
    %886 = vmatpush1.msra.mxu0 0.0
    %887 = vmatprep.subr.mxu0 0.0
    %888 = vmatpush1.msra.mxu0 0.0
    %889 = vmatprep.subr.mxu0 0.0
    %890 = vmatpush1.msra.mxu0 0.0
    %891 = vmatprep.subr.mxu0 0.0
    %892 = vmatpush1.msra.mxu0 0.0
    %893 = vmatprep.subr.mxu0 0.0
    %894 = vmatpush1.msra.mxu0 0.0
    %895 = vmatprep.mubr.f32.mxu0 0.0
    %896 = vmatmul.mubr.f32.gmra.mrb[0].mxu0 %v820
    %v897 = vpop.f32.mrb[0].mxu0
    %v898 = vadd.f32 %v802, %v897
    %v899 = vpop.f32.mrb[0].mxu0
    %900 = vmatprep.mubr.f32.mxu0 0.0
    %901 = vmatmul.mubr.f32.gmra.mrb[0].mxu0 %v823
    %v902 = vpop.f32.mrb[0].mxu0
    %v903 = vadd.f32 %v807, %v902
    %v904 = vpop.f32.mrb[0].mxu0
    %905 = vmatprep.mubr.f32.mxu0 0.0
    %906 = vmatmul.mubr.f32.gmra.mrb[0].mxu0 %v826
    %v907 = vpop.f32.mrb[0].mxu0
    %v908 = vadd.f32 %v812, %v907
    %v909 = vpop.f32.mrb[0].mxu0
    %910 = vmatprep.mubr.f32.mxu0 0.0
    %911 = vmatmul.mubr.f32.gmra.mrb[0].mxu0 %v829
    %v912 = vpop.f32.mrb[0].mxu0
    %v913 = vadd.f32 %v817, %v912
    %v914 = vpop.f32.mrb[0].mxu0
    %915 = vdwg.mxu0
    %v916 = vtanh.pop %v898
    %v917 = vtanh.pop %v903
    %v918 = vtanh.pop %v908
    %v919 = vtanh.pop %v913
    %v920 = vld [vmem:[%s6] sm:$0xff]
    %v921 = vld [vmem:[%s6 + $0x8] sm:$0xff]
    %v922 = vld [vmem:[%s6 + $0x10] sm:$0xff]
    %v923 = vld [vmem:[%s6 + $0x18] sm:$0xff]
    %v924 = vld [vmem:[%s11] sm:$0xff]
    %v925 = vld [vmem:[%s11 + $0x8] sm:$0xff]
    %v926 = vld [vmem:[%s11 + $0x10] sm:$0xff]
    %v927 = vld [vmem:[%s11 + $0x18] sm:$0xff]
    %929 = vset.pattern.permute.xlu0 0
    %930 = vperm.xlu0 %929, %v924
    %v931 = vpop.permute.xlu0 %930
    %934 = vset.pattern.permute.xlu0 0
    %935 = vperm.xlu0 %934, %v925
    %v936 = vpop.permute.xlu0 %935
    %939 = vset.pattern.permute.xlu0 0
    %940 = vperm.xlu0 %939, %v926
    %v941 = vpop.permute.xlu0 %940
    %944 = vset.pattern.permute.xlu0 0
    %945 = vperm.xlu0 %944, %v927
    %v946 = vpop.permute.xlu0 %945
    %v949 = vsel %vm560, %v920, 0
    %v952 = vsel %vm560, %v921, 0
    %v955 = vsel %vm560, %v922, 0
    %v958 = vsel %vm560, %v923, 0
    %960 = vmatprep.subr.mxu0 0.0
    %961 = vmatpush1.msra.mxu0 %v916
    %962 = vmatprep.subr.mxu0 0.0
    %963 = vmatpush1.msra.mxu0 %v917
    %964 = vmatprep.subr.mxu0 0.0
    %965 = vmatpush1.msra.mxu0 %v918
    %966 = vmatprep.subr.mxu0 0.0
    %967 = vmatpush1.msra.mxu0 %v919
    %968 = vmatprep.subr.mxu0 0.0
    %969 = vmatpush1.msra.mxu0 0.0
    %970 = vmatprep.subr.mxu0 0.0
    %971 = vmatpush1.msra.mxu0 0.0
    %972 = vmatprep.subr.mxu0 0.0
    %973 = vmatpush1.msra.mxu0 0.0
    %974 = vmatprep.subr.mxu0 0.0
    %975 = vmatpush1.msra.mxu0 0.0
    %976 = vmatprep.subr.mxu0 0.0
    %977 = vmatpush1.msra.mxu0 0.0
    %978 = vmatprep.subr.mxu0 0.0
    %979 = vmatpush1.msra.mxu0 0.0
    %980 = vmatprep.subr.mxu0 0.0
    %981 = vmatpush1.msra.mxu0 0.0
    %982 = vmatprep.subr.mxu0 0.0
    %983 = vmatpush1.msra.mxu0 0.0
    %984 = vmatprep.subr.mxu0 0.0
    %985 = vmatpush1.msra.mxu0 0.0
    %986 = vmatprep.subr.mxu0 0.0
    %987 = vmatpush1.msra.mxu0 0.0
    %988 = vmatprep.subr.mxu0 0.0
    %989 = vmatpush1.msra.mxu0 0.0
    %990 = vmatprep.subr.mxu0 0.0
    %991 = vmatpush1.msra.mxu0 0.0
    %992 = vmatprep.subr.mxu0 0.0
    %993 = vmatpush1.msra.mxu0 0.0
    %994 = vmatprep.subr.mxu0 0.0
    %995 = vmatpush1.msra.mxu0 0.0
    %996 = vmatprep.subr.mxu0 0.0
    %997 = vmatpush1.msra.mxu0 0.0
    %998 = vmatprep.subr.mxu0 0.0
    %999 = vmatpush1.msra.mxu0 0.0
    %1000 = vmatprep.subr.mxu0 0.0
    %1001 = vmatpush1.msra.mxu0 0.0
    %1002 = vmatprep.subr.mxu0 0.0
    %1003 = vmatpush1.msra.mxu0 0.0
    %1004 = vmatprep.subr.mxu0 0.0
    %1005 = vmatpush1.msra.mxu0 0.0
    %1006 = vmatprep.subr.mxu0 0.0
    %1007 = vmatpush1.msra.mxu0 0.0
    %1008 = vmatprep.subr.mxu0 0.0
    %1009 = vmatpush1.msra.mxu0 0.0
    %1010 = vmatprep.subr.mxu0 0.0
    %1011 = vmatpush1.msra.mxu0 0.0
    %1012 = vmatprep.subr.mxu0 0.0
    %1013 = vmatpush1.msra.mxu0 0.0
    %1014 = vmatprep.subr.mxu0 0.0
    %1015 = vmatpush1.msra.mxu0 0.0
    %1016 = vmatprep.subr.mxu0 0.0
    %1017 = vmatpush1.msra.mxu0 0.0
    %1018 = vmatprep.subr.mxu0 0.0
    %1019 = vmatpush1.msra.mxu0 0.0
    %1020 = vmatprep.subr.mxu0 0.0
    %1021 = vmatpush1.msra.mxu0 0.0
    %1022 = vmatprep.subr.mxu0 0.0
    %1023 = vmatpush1.msra.mxu0 0.0
    %1024 = vmatprep.mubr.f32.mxu0 0.0
    %1025 = vmatmul.mubr.f32.gmra.mrb[0].mxu0 %v949
    %v1026 = vpop.f32.mrb[0].mxu0
    %v1027 = vadd.f32 %v931, %v1026
    %v1028 = vpop.f32.mrb[0].mxu0
    %1029 = vmatprep.mubr.f32.mxu0 0.0
    %1030 = vmatmul.mubr.f32.gmra.mrb[0].mxu0 %v952
    %v1031 = vpop.f32.mrb[0].mxu0
    %v1032 = vadd.f32 %v936, %v1031
    %v1033 = vpop.f32.mrb[0].mxu0
    %1034 = vmatprep.mubr.f32.mxu0 0.0
    %1035 = vmatmul.mubr.f32.gmra.mrb[0].mxu0 %v955
    %v1036 = vpop.f32.mrb[0].mxu0
    %v1037 = vadd.f32 %v941, %v1036
    %v1038 = vpop.f32.mrb[0].mxu0
    %1039 = vmatprep.mubr.f32.mxu0 0.0
    %1040 = vmatmul.mubr.f32.gmra.mrb[0].mxu0 %v958
    %v1041 = vpop.f32.mrb[0].mxu0
    %v1042 = vadd.f32 %v946, %v1041
    %v1043 = vpop.f32.mrb[0].mxu0
    %1044 = vdwg.mxu0
    %v1045 = vtanh.pop %v1027
    %v1046 = vtanh.pop %v1032
    %v1047 = vtanh.pop %v1037
    %v1048 = vtanh.pop %v1042
    %v1049 = vld [vmem:[%s7] sm:$0xff]
    %v1050 = vld [vmem:[%s7 + $0x8] sm:$0xff]
    %v1051 = vld [vmem:[%s7 + $0x10] sm:$0xff]
    %v1052 = vld [vmem:[%s7 + $0x18] sm:$0xff]
    %v1053 = vld [vmem:[%s12] sm:$0xff]
    %v1054 = vld [vmem:[%s12 + $0x8] sm:$0xff]
    %v1055 = vld [vmem:[%s12 + $0x10] sm:$0xff]
    %v1056 = vld [vmem:[%s12 + $0x18] sm:$0xff]
    %1058 = vset.pattern.permute.xlu0 0
    %1059 = vperm.xlu0 %1058, %v1053
    %v1060 = vpop.permute.xlu0 %1059
    %1063 = vset.pattern.permute.xlu0 0
    %1064 = vperm.xlu0 %1063, %v1054
    %v1065 = vpop.permute.xlu0 %1064
    %1068 = vset.pattern.permute.xlu0 0
    %1069 = vperm.xlu0 %1068, %v1055
    %v1070 = vpop.permute.xlu0 %1069
    %1073 = vset.pattern.permute.xlu0 0
    %1074 = vperm.xlu0 %1073, %v1056
    %v1075 = vpop.permute.xlu0 %1074
    %v1078 = vsel %vm560, %v1049, 0
    %v1081 = vsel %vm560, %v1050, 0
    %v1084 = vsel %vm560, %v1051, 0
    %v1087 = vsel %vm560, %v1052, 0
    %1089 = vmatprep.subr.mxu0 0.0
    %1090 = vmatpush1.msra.mxu0 %v1045
    %1091 = vmatprep.subr.mxu0 0.0
    %1092 = vmatpush1.msra.mxu0 %v1046
    %1093 = vmatprep.subr.mxu0 0.0
    %1094 = vmatpush1.msra.mxu0 %v1047
    %1095 = vmatprep.subr.mxu0 0.0
    %1096 = vmatpush1.msra.mxu0 %v1048
    %1097 = vmatprep.subr.mxu0 0.0
    %1098 = vmatpush1.msra.mxu0 0.0
    %1099 = vmatprep.subr.mxu0 0.0
    %1100 = vmatpush1.msra.mxu0 0.0
    %1101 = vmatprep.subr.mxu0 0.0
    %1102 = vmatpush1.msra.mxu0 0.0
    %1103 = vmatprep.subr.mxu0 0.0
    %1104 = vmatpush1.msra.mxu0 0.0
    %1105 = vmatprep.subr.mxu0 0.0
    %1106 = vmatpush1.msra.mxu0 0.0
    %1107 = vmatprep.subr.mxu0 0.0
    %1108 = vmatpush1.msra.mxu0 0.0
    %1109 = vmatprep.subr.mxu0 0.0
    %1110 = vmatpush1.msra.mxu0 0.0
    %1111 = vmatprep.subr.mxu0 0.0
    %1112 = vmatpush1.msra.mxu0 0.0
    %1113 = vmatprep.subr.mxu0 0.0
    %1114 = vmatpush1.msra.mxu0 0.0
    %1115 = vmatprep.subr.mxu0 0.0
    %1116 = vmatpush1.msra.mxu0 0.0
    %1117 = vmatprep.subr.mxu0 0.0
    %1118 = vmatpush1.msra.mxu0 0.0
    %1119 = vmatprep.subr.mxu0 0.0
    %1120 = vmatpush1.msra.mxu0 0.0
    %1121 = vmatprep.subr.mxu0 0.0
    %1122 = vmatpush1.msra.mxu0 0.0
    %1123 = vmatprep.subr.mxu0 0.0
    %1124 = vmatpush1.msra.mxu0 0.0
    %1125 = vmatprep.subr.mxu0 0.0
    %1126 = vmatpush1.msra.mxu0 0.0
    %1127 = vmatprep.subr.mxu0 0.0
    %1128 = vmatpush1.msra.mxu0 0.0
    %1129 = vmatprep.subr.mxu0 0.0
    %1130 = vmatpush1.msra.mxu0 0.0
    %1131 = vmatprep.subr.mxu0 0.0
    %1132 = vmatpush1.msra.mxu0 0.0
    %1133 = vmatprep.subr.mxu0 0.0
    %1134 = vmatpush1.msra.mxu0 0.0
    %1135 = vmatprep.subr.mxu0 0.0
    %1136 = vmatpush1.msra.mxu0 0.0
    %1137 = vmatprep.subr.mxu0 0.0
    %1138 = vmatpush1.msra.mxu0 0.0
    %1139 = vmatprep.subr.mxu0 0.0
    %1140 = vmatpush1.msra.mxu0 0.0
    %1141 = vmatprep.subr.mxu0 0.0
    %1142 = vmatpush1.msra.mxu0 0.0
    %1143 = vmatprep.subr.mxu0 0.0
    %1144 = vmatpush1.msra.mxu0 0.0
    %1145 = vmatprep.subr.mxu0 0.0
    %1146 = vmatpush1.msra.mxu0 0.0
    %1147 = vmatprep.subr.mxu0 0.0
    %1148 = vmatpush1.msra.mxu0 0.0
    %1149 = vmatprep.subr.mxu0 0.0
    %1150 = vmatpush1.msra.mxu0 0.0
    %1151 = vmatprep.subr.mxu0 0.0
    %1152 = vmatpush1.msra.mxu0 0.0
    %1153 = vmatprep.mubr.f32.mxu0 0.0
    %1154 = vmatmul.mubr.f32.gmra.mrb[0].mxu0 %v1078
    %v1155 = vpop.f32.mrb[0].mxu0
    %v1156 = vadd.f32 %v1060, %v1155
    %v1157 = vpop.f32.mrb[0].mxu0
    %1158 = vmatprep.mubr.f32.mxu0 0.0
    %1159 = vmatmul.mubr.f32.gmra.mrb[0].mxu0 %v1081
    %v1160 = vpop.f32.mrb[0].mxu0
    %v1161 = vadd.f32 %v1065, %v1160
    %v1162 = vpop.f32.mrb[0].mxu0
    %1163 = vmatprep.mubr.f32.mxu0 0.0
    %1164 = vmatmul.mubr.f32.gmra.mrb[0].mxu0 %v1084
    %v1165 = vpop.f32.mrb[0].mxu0
    %v1166 = vadd.f32 %v1070, %v1165
    %v1167 = vpop.f32.mrb[0].mxu0
    %1168 = vmatprep.mubr.f32.mxu0 0.0
    %1169 = vmatmul.mubr.f32.gmra.mrb[0].mxu0 %v1087
    %v1170 = vpop.f32.mrb[0].mxu0
    %v1171 = vadd.f32 %v1075, %v1170
    %v1172 = vpop.f32.mrb[0].mxu0
    %1173 = vdwg.mxu0
    %v1174 = vtanh.pop %v1156
    %v1175 = vtanh.pop %v1161
    %v1176 = vtanh.pop %v1166
    %v1177 = vtanh.pop %v1171
    %v1178 = vld [vmem:[%s13] sm:$0xff]
    %v1179 = vld [vmem:[%s13 + $0x8] sm:$0xff]
    %v1180 = vld [vmem:[%s13 + $0x10] sm:$0xff]
    %v1181 = vld [vmem:[%s13 + $0x18] sm:$0xff]
    %1183 = vset.pattern.permute.xlu0 0
    %1184 = vperm.xlu0 %1183, %v1178
    %v1185 = vpop.permute.xlu0 %1184
    %1188 = vset.pattern.permute.xlu0 0
    %1189 = vperm.xlu0 %1188, %v1179
    %v1190 = vpop.permute.xlu0 %1189
    %1193 = vset.pattern.permute.xlu0 0
    %1194 = vperm.xlu0 %1193, %v1180
    %v1195 = vpop.permute.xlu0 %1194
    %1198 = vset.pattern.permute.xlu0 0
    %1199 = vperm.xlu0 %1198, %v1181
    %v1200 = vpop.permute.xlu0 %1199
    %v1202 = vmul.f32 %v1174, %v1185
    %v1203 = vmul.f32 %v1175, %v1190
    %v1204 = vmul.f32 %v1176, %v1195
    %v1205 = vmul.f32 %v1177, %v1200
    %v1206 = vadd.f32 %v1202, %v1203
    %v1207 = vadd.f32 %v1206, %v1204
    %v1208 = vadd.f32 %v1207, %v1205
    %v1209 = vrot.slane %v1208, 4
    %v1210 = vadd.f32 %v1208, %v1209
    %v1211 = vrot.slane %v1210, 2
    %v1212 = vadd.f32 %v1210, %v1211
    %v1213 = vrot.slane %v1212, 1
    %v1214 = vadd.f32 %v1212, %v1213
    %v1215 = vld [vmem:[#allocation2] sm:$0x1]
    %1217 = vset.pattern.permute.xlu0 0
    %1218 = vperm.xlu0 %1217, %v1215
    %v1219 = vpop.permute.xlu0 %1218
    %v1221 = vlaneseq
    %v1222 = vshrl.u32 %v1221, 7
    %v1223 = vsub.s32 0, %v1222
    %v1224 = vrot.slane %v1219, %v1223
    %v1225 = vadd.f32 %v1214, %v1224
    %1226 = vst [vmem:[#allocation3] sm:$0x1] %v1225
    // Predicated region
    $region62: #{tpu_custom_call.1} parent=1 // pred_check
      _
    $region63: #{tpu_custom_call.1} parent=1 // pred_check_branch
      %1228 = sbr.rel (0) target = $region65
    $region64: #{tpu_custom_call.1} parent=1 // pred_region
      %s1230 = ssub.s32 16, 16
      %1231 = vsyncadd [#allocation4], %s1230
      %s1233 = sshll.u32 [#allocation3], 4
      %s1234 = int_to_ptr.vmem [resolvable:$true] %s1233
      %1236 = dma.vmem_to_hbm [thread:$0]  %s1234, 16, %s15, [#allocation4]
    $region65: #{tpu_custom_call.1} parent=1 // pred_fallthru
      _
    // Predicated region
    $region66: #{tpu_custom_call.1} parent=1 // pred_check
      _
    $region67: #{tpu_custom_call.1} parent=1 // pred_check_branch
      %1238 = sbr.rel (0) target = $region69
    $region68: #{tpu_custom_call.1} parent=1 // pred_region
      %1239 = dma.done [#allocation4], 16
    $region69: #{tpu_custom_call.1} parent=1 // pred_fallthru
      _
    %1240 = vsyncpa [#allocation4], 1

</llo_original>
